<compile_context>
chip_gen: v5e
topology: v5e:2x2
jax: 0.10.0
libtpu: 0.0.40
codegen_flags: <defaults>
</compile_context>

<pallas_src>
import functools

import jax
import jax.numpy as jnp
from jax.experimental import pallas as pl
from jax.experimental.pallas import tpu as pltpu


def _cdiv(a, b):
    return -(-a // b)


def _vmem_capacity_bytes():
    """Physical VMEM per TensorCore; conservative (v7x) fallback if unknown."""
    try:
        info = pltpu.get_tpu_info()
        cap = getattr(info, "vmem_capacity_bytes", None)
        if cap:
            return int(cap)
    except Exception:
        pass
    return 64 << 20


def _se_kernel(x_ref, w1t_ref, w2t_ref, o_ref, *, inv_hw):
    # x_ref : (Bt, C, HW)  input tile in native dtype (last block may be ragged)
    # w1t_ref: (C, Cr)      fc1 weight, pre-transposed (grid-resident)
    # w2t_ref: (Cr, C)      fc2 weight, pre-transposed
    # o_ref : (Bt, C, HW)
    x = x_ref[...]

    # Squeeze: global average pool over the spatial lane axis, f32 accumulation,
    # without materializing a full-tile f32 copy of x.
    pooled = jnp.sum(x, axis=-1, dtype=jnp.float32) * inv_hw          # (Bt, C)

    # Excitation: two tiny bias-free linears in f32, ReLU then sigmoid.
    h = jnp.dot(pooled, w1t_ref[...].astype(jnp.float32),
                preferred_element_type=jnp.float32)                   # (Bt, Cr)
    h = jnp.maximum(h, 0.0)
    s = jnp.dot(h, w2t_ref[...].astype(jnp.float32),
                preferred_element_type=jnp.float32)                   # (Bt, C)

    # Fold the residual into the gain: x + x*s == x * (1 + s); apply in the
    # input's native dtype so the dominant vst loop stays narrow for bf16.
    g = (1.0 + jax.nn.sigmoid(s)).astype(x.dtype)                     # (Bt, C)
    o_ref[...] = x * g[:, :, None]


def single_modal_attention(x, w1, w2, *, target_block_bytes=8 << 20):
    """x: (B, C, H, W); w1: (C//r, C); w2: (C, C//r)  (PyTorch Linear layouts)."""
    B, C, H, W = x.shape
    HW = H * W
    x_flat = x.reshape(B, C, HW)          # no spatial pad: block dims == array dims

    # --- per-generation VMEM budget ------------------------------------------
    vmem_cap = _vmem_capacity_bytes()
    vmem_limit = min(vmem_cap * 3 // 4, 100 << 20)   # ~48 MiB v7x, ~96 MiB v5e/v6e

    elem_bytes = jnp.dtype(x.dtype).itemsize
    per_image_bytes = C * HW * elem_bytes
    weight_bytes = (w1.size + w2.size) * jnp.dtype(w1.dtype).itemsize
    slack = 2 << 20

    # Largest block such that double-buffered in + out (+ resident weights)
    # fits the scoped limit: 4*block + 2*weights + slack <= vmem_limit.
    budget_block_bytes = max(per_image_bytes,
                             (vmem_limit - 2 * weight_bytes - slack) // 4)
    target = min(int(target_block_bytes), int(budget_block_bytes))
    bt = max(1, min(B, target // per_image_bytes))
    if B >= 2:                             # keep >= 2 grid steps (megacore / 2 TCs)
        bt = max(1, min(bt, _cdiv(B, 2)))
    n_blocks = _cdiv(B, bt)                # ragged trailing block handled by Pallas

    # Never set the scoped limit below the real requirement (bt may floor at 1).
    required = 4 * bt * per_image_bytes + 2 * weight_bytes + slack
    vmem_limit = int(min(max(vmem_limit, required), vmem_cap))
    # TODO(synk): if one image exceeds ~1/4 of VMEM, add a second grid axis over
    # HW with an f32 pool accumulator in scratch instead of one whole-image block.

    # Pre-transpose weights so the kernel does (Bt,C)@(C,Cr) and (Bt,Cr)@(Cr,C).
    w1t = jnp.transpose(w1)                # (C, Cr)
    w2t = jnp.transpose(w2)                # (Cr, C)

    kernel = functools.partial(_se_kernel, inv_hw=1.0 / HW)

    out_flat = pl.pallas_call(
        kernel,
        out_shape=jax.ShapeDtypeStruct((B, C, HW), x.dtype),
        grid_spec=pl.GridSpec(
            grid=(n_blocks,),
            in_specs=[
                pl.BlockSpec((bt, C, HW), lambda b: (b, 0, 0)),
                pl.BlockSpec(w1t.shape, lambda b: (0, 0)),   # grid-resident weights
                pl.BlockSpec(w2t.shape, lambda b: (0, 0)),
            ],
            out_specs=pl.BlockSpec((bt, C, HW), lambda b: (b, 0, 0)),
        ),
        compiler_params=pltpu.CompilerParams(
            dimension_semantics=("parallel",),
            vmem_limit_bytes=vmem_limit,
        ),
    )(x_flat, w1t, w2t)

    return out_flat.reshape(B, C, H, W)


def _reference(x, w1, w2):
    # Pure-JAX reference mirroring the PyTorch forward.
    y = jnp.mean(x, axis=(2, 3))                         # (B, C)
    y = jnp.maximum(y @ w1.T, 0.0)                       # (B, C//r)
    y = jax.nn.sigmoid(y @ w2.T)                         # (B, C)
    return x + x * y[:, :, None, None]


if __name__ == "__main__":
    key = jax.random.PRNGKey(0)
    k_x, k_w1, k_w2 = jax.random.split(key, 3)

    B, C, H, W = 2, 32, 16, 16        # channel=32, reduction=16 -> hidden=2
    reduction = 16
    Cr = C // reduction

    x = jax.random.normal(k_x, (B, C, H, W), dtype=jnp.float32)
    # Deterministic synthetic weights (PyTorch Linear weight shapes, no bias).
    w1 = jax.random.normal(k_w1, (Cr, C), dtype=jnp.float32) * (1.0 / C) ** 0.5
    w2 = jax.random.normal(k_w2, (C, Cr), dtype=jnp.float32) * (1.0 / Cr) ** 0.5

    out = jax.block_until_ready(single_modal_attention(x, w1, w2))
    ref = _reference(x, w1, w2)
    assert jnp.allclose(out, ref, atol=1e-5, rtol=1e-5), "mismatch vs reference"

    # Second case: non-multiple-of-128 spatial size (14x14) and odd batch (3)
    # exercises the masked tail store and ragged trailing batch block (no pads).
    x2 = jax.random.normal(k_x, (3, C, 14, 14), dtype=jnp.float32)
    out2 = jax.block_until_ready(single_modal_attention(x2, w1, w2))
    ref2 = _reference(x2, w1, w2)
    assert jnp.allclose(out2, ref2, atol=1e-5, rtol=1e-5), "mismatch vs reference (ragged case)"

    print("KERNEL_OK")
</pallas_src>

<mosaic_0001>
module attributes {stable_mosaic.version = 11 : i64} {
  func.func @_se_kernel(%arg0: i32, %arg1: memref<1x32x256xf32, #tpu.memory_space<vmem>>, %arg2: memref<32x2xf32, #tpu.memory_space<vmem>>, %arg3: memref<2x32xf32, #tpu.memory_space<vmem>>, %arg4: memref<1x32x256xf32, #tpu.memory_space<vmem>>) attributes {dimension_semantics = [#tpu.dimension_semantics<parallel>], iteration_bounds = array<i64: 2>, scalar_prefetch = 0 : i64, scratch_operands = 0 : i64, tpu.core_type = #tpu.core_type<tc>, window_params = [{transform_indices = @transform_0, window_bounds = array<i64: 1, 32, 256>}, {pipeline_mode = #tpu.pipeline_mode<synchronous>, transform_indices = @transform_1, window_bounds = array<i64: 32, 2>}, {pipeline_mode = #tpu.pipeline_mode<synchronous>, transform_indices = @transform_2, window_bounds = array<i64: 2, 32>}, {transform_indices = @transform_3, window_bounds = array<i64: 1, 32, 256>}]} {
    %c0 = arith.constant 0 : index
    %c0_0 = arith.constant 0 : index
    %c0_1 = arith.constant 0 : index
    %0 = vector.load %arg1[%c0, %c0_0, %c0_1] : memref<1x32x256xf32, #tpu.memory_space<vmem>>, vector<1x32x256xf32>
    %cst = arith.constant dense<0.000000e+00> : vector<1x32xf32>
    %1 = vector.multi_reduction <add>, %0, %cst [2] : vector<1x32x256xf32> to vector<1x32xf32>
    %cst_2 = arith.constant 3.906250e-03 : f32
    %2 = vector.broadcast %cst_2 : f32 to vector<1x32xf32>
    %3 = arith.mulf %1, %2 : vector<1x32xf32>
    %c0_3 = arith.constant 0 : index
    %c0_4 = arith.constant 0 : index
    %4 = vector.load %arg2[%c0_3, %c0_4] : memref<32x2xf32, #tpu.memory_space<vmem>>, vector<32x2xf32>
    %cst_5 = arith.constant dense<0.000000e+00> : vector<1x2xf32>
    %5 = tpu.matmul %3, %4, %cst_5 {dimension_numbers = #tpu.dot_dimension_numbers<[1], [0], [0], [1], [0, 0, 1, 1], [], []>} : vector<1x32xf32>, vector<32x2xf32>, vector<1x2xf32> -> vector<1x2xf32>
    %cst_6 = arith.constant 0.000000e+00 : f32
    %6 = vector.broadcast %cst_6 : f32 to vector<1x2xf32>
    %7 = arith.maximumf %5, %6 : vector<1x2xf32>
    %c0_7 = arith.constant 0 : index
    %c0_8 = arith.constant 0 : index
    %8 = vector.load %arg3[%c0_7, %c0_8] : memref<2x32xf32, #tpu.memory_space<vmem>>, vector<2x32xf32>
    %cst_9 = arith.constant dense<0.000000e+00> : vector<1x32xf32>
    %9 = tpu.matmul %7, %8, %cst_9 {dimension_numbers = #tpu.dot_dimension_numbers<[1], [0], [0], [1], [0, 0, 1, 1], [], []>} : vector<1x2xf32>, vector<2x32xf32>, vector<1x32xf32> -> vector<1x32xf32>
    %10 = arith.negf %9 : vector<1x32xf32>
    %11 = math.exp %10 : vector<1x32xf32>
    %cst_10 = arith.constant 1.000000e+00 : f32
    %12 = vector.broadcast %cst_10 : f32 to vector<1x32xf32>
    %13 = arith.addf %12, %11 : vector<1x32xf32>
    %14 = arith.divf %12, %13 : vector<1x32xf32>
    %cst_11 = arith.constant 1.000000e+00 : f32
    %15 = vector.broadcast %cst_11 : f32 to vector<1x32xf32>
    %16 = arith.addf %15, %14 : vector<1x32xf32>
    %17 = vector.shape_cast %16 : vector<1x32xf32> to vector<1x32x1xf32>
    %18 = vector.broadcast %17 : vector<1x32x1xf32> to vector<1x32x256xf32>
    %19 = arith.mulf %0, %18 : vector<1x32x256xf32>
    %c0_12 = arith.constant 0 : index
    %c0_13 = arith.constant 0 : index
    %c0_14 = arith.constant 0 : index
    %20 = vector.load %arg4[%c0_12, %c0_13, %c0_14] : memref<1x32x256xf32, #tpu.memory_space<vmem>>, vector<1x32x256xf32>
    tpu.vector_store %arg4[%c0_12, %c0_13, %c0_14], %19 {strides = array<i32>} : memref<1x32x256xf32, #tpu.memory_space<vmem>>, vector<1x32x256xf32>,
    return
  }
  func.func @transform_0(%arg0: i32) -> (i32, i32, i32) {
    %c0_i32 = arith.constant 0 : i32
    %c0_i32_0 = arith.constant 0 : i32
    %c0_i32_1 = arith.constant 0 : i32
    return %arg0, %c0_i32, %c0_i32_0 : i32, i32, i32
  }
  func.func @transform_1(%arg0: i32) -> (i32, i32) {
    %c0_i32 = arith.constant 0 : i32
    %c0_i32_0 = arith.constant 0 : i32
    %c0_i32_1 = arith.constant 0 : i32
    return %c0_i32, %c0_i32_0 : i32, i32
  }
  func.func @transform_2(%arg0: i32) -> (i32, i32) {
    %c0_i32 = arith.constant 0 : i32
    %c0_i32_0 = arith.constant 0 : i32
    %c0_i32_1 = arith.constant 0 : i32
    return %c0_i32, %c0_i32_0 : i32, i32
  }
  func.func @transform_3(%arg0: i32) -> (i32, i32, i32) {
    %c0_i32 = arith.constant 0 : i32
    %c0_i32_0 = arith.constant 0 : i32
    %c0_i32_1 = arith.constant 0 : i32
    return %arg0, %c0_i32, %c0_i32_0 : i32, i32, i32
  }
}

</mosaic_0001>

<llo_original>
// kernel: tpu_custom_call.1
$region0: #{tpu_custom_call.1}
  #allocation0 [shape = 'u32[]', space=smem, size = 0x4, offset = 0x4, fixed_abs, tag = 'smem constant byte address 0x4 - core index']
  #allocation1 [shape = 'u32[72,128]{1,0:T(1,128)}', space=vmem, size = 0x9000, scoped, tag = 'internal scratch']
  %s0 = inlined_call_operand.hbm [shape: f32[2,32,256], index: 0, kind: input, shape index: {}]
  %s1 = inlined_call_operand.vmem [shape: f32[32,2], index: 1, kind: input, shape index: {}]
  %s2 = inlined_call_operand.vmem [shape: f32[2,32], index: 2, kind: input, shape index: {}]
  %s3 = inlined_call_operand.hbm [shape: f32[2,32,256], index: 3, kind: output, shape index: {}]
  %s4 = sld [smem:[#allocation0]]
  $region49: #{tpu_custom_call.1} parent=0
    _
  %s6 = ssub.s32 1, %s4
  %s7 = scalar_select 0, %s6, %s4
  $region1: #{tpu_custom_call.1} parent=0
    #allocation2 [shape = 'u8[65536]{0}', space=vmem, size = 0x10000, scoped, tag = 'input window, operand 0']
    #allocation3 [shape = 's32[2]{0}', space=sflag, size = 0x8, scoped, tag = 'scoped memory for tpu_custom_call.1']
    #allocation4 [shape = 's32[2]{0}', space=sflag, size = 0x8, scoped, tag = 'scoped memory for tpu_custom_call.1']
    #allocation5 [shape = 'u8[65536]{0}', space=vmem, size = 0x10000, scoped, tag = 'output window, operand 0']
    %8 = vsyncpa [#allocation3], 0
    %s9 = scalar_lea.sflag [#allocation3], 1
    %10 = vsyncpa %s9, 0
    %11 = vsyncpa [#allocation4], 0
    %s12 = scalar_lea.sflag [#allocation4], 1
    %13 = vsyncpa %s12, 0
    loop: start=0, step=1, limit=4
    $region2: #{tpu_custom_call.1} parent=1 // loop_pre_header
      _
    $region3: #{tpu_custom_call.1} parent=1 // loop_header
      %s15 = sphi 0, %s19
      %p16 = scmp.ge.s32.totalorder %s15, 4
      %s25 = sphi 0, %s27
      %s28 = sphi 0, %s25
      %s29 = sphi 0, %s28
      %s45 = sphi 0, %s29
      %s49 = sphi 0, %s49
      %s51 = sphi 0, %s49
      %s52 = sphi 0, %s51
      %s66 = sphi 0, %s52
      %s70 = sphi 0, %s70
      %s72 = sphi 0, %s70
      %s73 = sphi 0, %s72
      %s87 = sphi 0, %s73
      %s93 = sphi 0, %s95
      %s96 = sphi 0, %s93
      %s97 = sphi 0, %s96
      %s113 = sphi 0, %s97
    $region4: #{tpu_custom_call.1} parent=1 // loop_header_branch
      %18 = sbr.rel (%p16) target = $region8
    $region5: #{tpu_custom_call.1} parent=1 // loop_body
      %s20 = ssub.s32 %s15, 1
      %s21 = ssub.s32 %s15, 2
      %s22 = sadd.s32 %s15, 1
      %s23 = ssub.s32 %s15, %s22
      %p24 = scmp.eq.s32.totalorder %s23, 0
      %s26 = sadd.s32 %s25, 1
      %s27 = scalar_select %p24, %s25, %s26
      %p30 = pneg %p24
      %p31 = scmp.eq.s32.totalorder %s15, 1
      %p32 = por %p30, %p31
      %p33 = scmp.ne.s32.totalorder %s25, %s28
      %p34 = scmp.eq.s32.totalorder %s15, 0
      %p35 = por %p33, %p34
      %p36 = scmp.ne.s32.totalorder %s25, %s28
      %p37 = scmp.eq.s32.totalorder %s20, 1
      %p38 = por %p36, %p37
      %p39 = scmp.ne.s32.totalorder %s28, %s29
      %p40 = scmp.eq.s32.totalorder %s20, 0
      %p41 = por %p39, %p40
      %p42 = scmp.ne.s32.totalorder %s28, %s29
      %p43 = scmp.eq.s32.totalorder %s21, 1
      %p44 = por %p42, %p43
      %p46 = scmp.ne.s32.totalorder %s29, %s45
      %p47 = scmp.eq.s32.totalorder %s21, 0
      %p48 = por %p46, %p47
      %s50 = sadd.s32 %s49, 1
      %p53 = scmp.eq.s32.totalorder %s15, 1
      %p54 = scmp.ne.s32.totalorder %s49, %s51
      %p55 = scmp.eq.s32.totalorder %s15, 0
      %p56 = por %p54, %p55
      %p57 = scmp.ne.s32.totalorder %s49, %s51
      %p58 = scmp.eq.s32.totalorder %s20, 1
      %p59 = por %p57, %p58
      %p60 = scmp.ne.s32.totalorder %s51, %s52
      %p61 = scmp.eq.s32.totalorder %s20, 0
      %p62 = por %p60, %p61
      %p63 = scmp.ne.s32.totalorder %s51, %s52
      %p64 = scmp.eq.s32.totalorder %s21, 1
      %p65 = por %p63, %p64
      %p67 = scmp.ne.s32.totalorder %s52, %s66
      %p68 = scmp.eq.s32.totalorder %s21, 0
      %p69 = por %p67, %p68
      %s71 = sadd.s32 %s70, 1
      %p74 = scmp.eq.s32.totalorder %s15, 1
      %p75 = scmp.ne.s32.totalorder %s70, %s72
      %p76 = scmp.eq.s32.totalorder %s15, 0
      %p77 = por %p75, %p76
      %p78 = scmp.ne.s32.totalorder %s70, %s72
      %p79 = scmp.eq.s32.totalorder %s20, 1
      %p80 = por %p78, %p79
      %p81 = scmp.ne.s32.totalorder %s72, %s73
      %p82 = scmp.eq.s32.totalorder %s20, 0
      %p83 = por %p81, %p82
      %p84 = scmp.ne.s32.totalorder %s72, %s73
      %p85 = scmp.eq.s32.totalorder %s21, 1
      %p86 = por %p84, %p85
      %p88 = scmp.ne.s32.totalorder %s73, %s87
      %p89 = scmp.eq.s32.totalorder %s21, 0
      %p90 = por %p88, %p89
      %s91 = ssub.s32 %s15, %s22
      %p92 = scmp.eq.s32.totalorder %s91, 0
      %s94 = sadd.s32 %s93, 1
      %s95 = scalar_select %p92, %s93, %s94
      %p98 = pneg %p92
      %p99 = scmp.eq.s32.totalorder %s15, 1
      %p100 = por %p98, %p99
      %p101 = scmp.ne.s32.totalorder %s93, %s96
      %p102 = scmp.eq.s32.totalorder %s15, 0
      %p103 = por %p101, %p102
      %p104 = scmp.ne.s32.totalorder %s93, %s96
      %p105 = scmp.eq.s32.totalorder %s20, 1
      %p106 = por %p104, %p105
      %p107 = scmp.ne.s32.totalorder %s96, %s97
      %p108 = scmp.eq.s32.totalorder %s20, 0
      %p109 = por %p107, %p108
      %p110 = scmp.ne.s32.totalorder %s96, %s97
      %p111 = scmp.eq.s32.totalorder %s21, 1
      %p112 = por %p110, %p111
      %p114 = scmp.ne.s32.totalorder %s97, %s113
      %p115 = scmp.eq.s32.totalorder %s21, 0
      %p116 = por %p114, %p115
      %p117 = scmp.le.s32.totalorder 1, %s15
      %p118 = scmp.lt.s32.totalorder %s15, 3
      %p119 = pnand %p117, %p118
      %p120 = pneg %p119
      // Predicated region
      $region9: #{tpu_custom_call.1} parent=5 // pred_check
        _
      $region10: #{tpu_custom_call.1} parent=5 // pred_check_branch
        %122 = sbr.rel (%p119) target = $region12
      $region11: #{tpu_custom_call.1} parent=5 // pred_region
        %s123 = ssub.s32 %s15, 1
        // Predicated region
        $region13: #{tpu_custom_call.1} parent=11 // pred_check
          %p124 = pneg %p62
        $region14: #{tpu_custom_call.1} parent=11 // pred_check_branch
          %126 = sbr.rel (%p124) target = $region16
        $region15: #{tpu_custom_call.1} parent=11 // pred_region
          _
        $region16: #{tpu_custom_call.1} parent=11 // pred_fallthru
          _
        // Predicated region
        $region17: #{tpu_custom_call.1} parent=11 // pred_check
          %p127 = pneg %p83
        $region18: #{tpu_custom_call.1} parent=11 // pred_check_branch
          %129 = sbr.rel (%p127) target = $region20
        $region19: #{tpu_custom_call.1} parent=11 // pred_region
          _
        $region20: #{tpu_custom_call.1} parent=11 // pred_fallthru
          _
      $region12: #{tpu_custom_call.1} parent=5 // pred_fallthru
        _
      %p130 = scmp.lt.s32.totalorder %s15, 2
      // Predicated region
      $region21: #{tpu_custom_call.1} parent=5 // pred_check
        %p131 = pneg %p130
      $region22: #{tpu_custom_call.1} parent=5 // pred_check_branch
        %133 = sbr.rel (%p131) target = $region24
      $region23: #{tpu_custom_call.1} parent=5 // pred_region
        // Predicated region
        $region25: #{tpu_custom_call.1} parent=23 // pred_check
          %p134 = pneg %p35
        $region26: #{tpu_custom_call.1} parent=23 // pred_check_branch
          %136 = sbr.rel (%p134) target = $region28
        $region27: #{tpu_custom_call.1} parent=23 // pred_region
          %s137 = sand.u32 %s25, 1
          %s138 = scalar_lea.sflag [#allocation3], %s137
          %s139 = sand.u32 %s25, 1
          %s140 = smul.addr %s139, 64
          %s141 = scalar_lea.vmem [#allocation2], %s140
          %143 = vsyncadd %s138, 0
          %s144 = smul.addr %s15, 8
          %s145 = smul.addr %s144, 8
          %s146 = scalar_lea.hbm %s0, %s145
          %s147 = sshll.u32 %s146, 4
          %s148 = int_to_ptr.hbm [resolvable:$true] %s147
          %s149 = sshll.u32 %s141, 4
          %s150 = int_to_ptr.vmem [resolvable:$true] %s149
          %155 = dma.hbm_to_vmem [thread:$0]  %s148, 1024, %s150, %s138, 256, 256, 16
        $region28: #{tpu_custom_call.1} parent=23 // pred_fallthru
          _
      $region24: #{tpu_custom_call.1} parent=5 // pred_fallthru
        _
      %p156 = scmp.le.s32.totalorder 1, %s15
      %p157 = scmp.lt.s32.totalorder %s15, 3
      %p158 = pnand %p156, %p157
      %p159 = pneg %p158
      // Predicated region
      $region29: #{tpu_custom_call.1} parent=5 // pred_check
        _
      $region30: #{tpu_custom_call.1} parent=5 // pred_check_branch
        %161 = sbr.rel (%p158) target = $region32
      $region31: #{tpu_custom_call.1} parent=5 // pred_region
        %s162 = ssub.s32 %s15, 1
        %s163 = sand.u32 %s28, 1
        %s164 = scalar_lea.sflag [#allocation3], %s163
        %s165 = sand.u32 %s28, 1
        %s166 = smul.addr %s165, 64
        %s167 = scalar_lea.vmem [#allocation2], %s166
        // Predicated region
        $region33: #{tpu_custom_call.1} parent=31 // pred_check
          %p168 = pneg %p41
        $region34: #{tpu_custom_call.1} parent=31 // pred_check_branch
          %170 = sbr.rel (%p168) target = $region36
        $region35: #{tpu_custom_call.1} parent=31 // pred_region
          %172 = dma.done %s164, 1024
        $region36: #{tpu_custom_call.1} parent=31 // pred_fallthru
          _
        %s173 = sand.u32 %s28, 1
        %s174 = scalar_lea.sflag [#allocation3], %s173
        %s175 = sand.u32 %s28, 1
        %s176 = smul.addr %s175, 64
        %s177 = scalar_lea.vmem [#allocation2], %s176
        %p178 = pneg %p41
        %p179 = pneg %p38
        %p180 = pneg %p62
        %p181 = pneg %p59
        %p182 = pneg %p83
        %p183 = pneg %p80
        %p184 = pneg %p109
        %p185 = pneg %p106
        %s186 = sand.u32 %s96, 1
        %s187 = scalar_lea.sflag [#allocation4], %s186
        %s188 = sand.u32 %s96, 1
        %s189 = smul.addr %s188, 64
        %s190 = scalar_lea.vmem [#allocation5], %s189
        %v191 = vld [vmem:[%s167] sm:$0xff]
        %v192 = vld [vmem:[%s167 + $0x8] sm:$0xff]
        %v193 = vld [vmem:[%s167 + $0x10] sm:$0xff]
        %v194 = vld [vmem:[%s167 + $0x18] sm:$0xff]
        %v195 = vld [vmem:[%s167 + $0x20] sm:$0xff]
        %v196 = vld [vmem:[%s167 + $0x28] sm:$0xff]
        %v197 = vld [vmem:[%s167 + $0x30] sm:$0xff]
        %v198 = vld [vmem:[%s167 + $0x38] sm:$0xff]
        %v199 = vadd.f32 %v191, %v192
        %200 = vadd.xlane.f32.xlu0 %v199
        %v201 = vpop.xlane.xlu0 %200
        %v202 = vadd.f32 %v193, %v194
        %203 = vadd.xlane.f32.xlu0 %v202
        %v204 = vpop.xlane.xlu0 %203
        %v205 = vadd.f32 %v195, %v196
        %206 = vadd.xlane.f32.xlu0 %v205
        %v207 = vpop.xlane.xlu0 %206
        %v208 = vadd.f32 %v197, %v198
        %209 = vadd.xlane.f32.xlu0 %v208
        %v210 = vpop.xlane.xlu0 %209
        %v211 = vmul.f32 %v201, 0.00390625
        %v212 = vmul.f32 %v204, 0.00390625
        %v213 = vmul.f32 %v207, 0.00390625
        %v214 = vmul.f32 %v210, 0.00390625
        %v215 = vld [vmem:[%s1] sm:$0xff]
        %v216 = vld [vmem:[%s1 + $0x8] sm:$0xff]
        %v217 = vld [vmem:[%s1 + $0x10] sm:$0xff]
        %v218 = vld [vmem:[%s1 + $0x18] sm:$0xff]
        %v223 = vlaneseq
        %v224 = vand.u32 %v223, 127
        %v225 = vperm.slane %v211, %v224
        %v226 = vadd.s32 %v224, 4294967288
        %v227 = vperm.slane %v212, %v226
        %vm228 = vcmask 130112
        %v229 = vsel %vm228, %v227, %v225
        %v230 = vadd.s32 %v224, 4294967280
        %v231 = vperm.slane %v213, %v230
        %vm232 = vcmask 195712
        %v233 = vsel %vm232, %v231, %v229
        %v234 = vadd.s32 %v224, 4294967272
        %v235 = vperm.slane %v214, %v234
        %vm236 = vcmask 261312
        %v237 = vsel %vm236, %v235, %v233
        %vm238 = vcmask 261120
        %v239 = vsel %vm238, %v237, 0
        %241 = vmatpush.msra.mxu0 0.0
        %242 = vmatpush.msra.mxu0 0.0
        %243 = vmatpush.msra.mxu0 0.0
        %244 = vmatpush.msra.mxu0 0.0
        %245 = vmatpush.msra.mxu0 0.0
        %246 = vmatpush.msra.mxu0 0.0
        %247 = vmatpush.msra.mxu0 0.0
        %248 = vmatpush.msra.mxu0 0.0
        %249 = vmatpush.msra.mxu0 0.0
        %250 = vmatpush.msra.mxu0 0.0
        %251 = vmatpush.msra.mxu0 0.0
        %252 = vmatpush.msra.mxu0 0.0
        %253 = vmatpush.msra.mxu0 %v218
        %254 = vmatpush.msra.mxu0 %v217
        %255 = vmatpush.msra.mxu0 %v216
        %256 = vmatpush.msra.mxu0 %v215
        %257 = vmatmul.f32.gmra.mxu0 %v239
        %v258 = vpop.f32.mrf.mxu0
        %v259 = vadd.f32 0.0, %v258
        %260 = vdwg.mxu0
        %v261 = vmax.f32 %v259, 0.0
        %v262 = vld [vmem:[%s2] sm:$0x3]
        %vm263 = vcmask 15360
        %v265 = vsel %vm263, %v261, 0
        %vm267 = vcmask 1041408
        %v269 = vsel %vm267, %v262, 0
        %271 = vmatpush.msra.mxu0 0.0
        %272 = vmatpush.msra.mxu0 0.0
        %273 = vmatpush.msra.mxu0 0.0
        %274 = vmatpush.msra.mxu0 0.0
        %275 = vmatpush.msra.mxu0 0.0
        %276 = vmatpush.msra.mxu0 0.0
        %277 = vmatpush.msra.mxu0 0.0
        %278 = vmatpush.msra.mxu0 0.0
        %279 = vmatpush.msra.mxu0 0.0
        %280 = vmatpush.msra.mxu0 0.0
        %281 = vmatpush.msra.mxu0 0.0
        %282 = vmatpush.msra.mxu0 0.0
        %283 = vmatpush.msra.mxu0 0.0
        %284 = vmatpush.msra.mxu0 0.0
        %285 = vmatpush.msra.mxu0 0.0
        %286 = vmatpush.msra.mxu0 %v269
        %287 = vmatmul.f32.gmra.mxu0 %v265
        %v288 = vpop.f32.mrf.mxu0
        %v289 = vadd.f32 0.0, %v288
        %290 = vdwg.mxu0
        %v291 = vxor.u32 %v289, 2147483648
        %v292 = vmul.f32 %v291, 1.442695
        %v293 = vpow.pop %v292
        %v294 = vadd.f32 %v293, 1.0
        %v295 = vrcp.pop %v294
        %v296 = vmul.f32 %v294, %v295
        %v297 = vsub.f32 1.0, %v296
        %v298 = vmul.f32 %v295, %v297
        %v299 = vadd.f32 %v295, %v298
        %vm300 = vweird.f32 %v294
        %vm301 = vweird.f32 %v295
        %vm302 = vmor %vm300, %vm301
        %v303 = vsel %vm302, %v295, %v299
        %v304 = vand.u32 2147483647, %v294
        %vm305 = vcmp.eq.f32.partialorder %v304, 8.507059e+37
        %v306 = vand.u32 %v294, 2147483648
        %v307 = vor.u32 1.1754944e-38, %v306
        %v308 = vsel %vm305, %v307, %v303
        %v309 = vmul.f32 1.0, %v308
        %v310 = vadd.f32 %v309, 1.0
        %v311 = vperm.slane %v310, 0
        %v312 = vlaneseq
        %v313 = vshrl.u32 %v312, 7
        %315 = vset.pattern.permute.xlu0 %v313
        %316 = vperm.xlu0 %315, %v311
        %v317 = vpop.permute.xlu0 %316
        %v318 = vlaneseq
        %v319 = vshrl.u32 %v318, 7
        %v320 = vadd.s32 %v319, 8
        %321 = vset.pattern.permute.xlu0 %v320
        %322 = vperm.xlu0 %321, %v311
        %v323 = vpop.permute.xlu0 %322
        %v324 = vlaneseq
        %v325 = vshrl.u32 %v324, 7
        %v326 = vadd.s32 %v325, 16
        %327 = vset.pattern.permute.xlu0 %v326
        %328 = vperm.xlu0 %327, %v311
        %v329 = vpop.permute.xlu0 %328
        %v330 = vlaneseq
        %v331 = vshrl.u32 %v330, 7
        %v332 = vadd.s32 %v331, 24
        %333 = vset.pattern.permute.xlu0 %v332
        %334 = vperm.xlu0 %333, %v311
        %v335 = vpop.permute.xlu0 %334
        %v336 = vmul.f32 %v191, %v317
        %v337 = vmul.f32 %v192, %v317
        %v338 = vmul.f32 %v193, %v323
        %v339 = vmul.f32 %v194, %v323
        %v340 = vmul.f32 %v195, %v329
        %v341 = vmul.f32 %v196, %v329
        %v342 = vmul.f32 %v197, %v335
        %v343 = vmul.f32 %v198, %v335
        %344 = vst [vmem:[%s190] sm:$0xff] %v336
        %345 = vst [vmem:[%s190 + $0x8] sm:$0xff] %v337
        %346 = vst [vmem:[%s190 + $0x10] sm:$0xff] %v338
        %347 = vst [vmem:[%s190 + $0x18] sm:$0xff] %v339
        %348 = vst [vmem:[%s190 + $0x20] sm:$0xff] %v340
        %349 = vst [vmem:[%s190 + $0x28] sm:$0xff] %v341
        %350 = vst [vmem:[%s190 + $0x30] sm:$0xff] %v342
        %351 = vst [vmem:[%s190 + $0x38] sm:$0xff] %v343
        %s352 = sand.u32 %s96, 1
        %s353 = scalar_lea.sflag [#allocation4], %s352
        %s354 = sand.u32 %s96, 1
        %s355 = smul.addr %s354, 64
        %s356 = scalar_lea.vmem [#allocation5], %s355
        // Predicated region
        $region37: #{tpu_custom_call.1} parent=31 // pred_check
          %p357 = pneg %p106
        $region38: #{tpu_custom_call.1} parent=31 // pred_check_branch
          %359 = sbr.rel (%p357) target = $region40
        $region39: #{tpu_custom_call.1} parent=31 // pred_region
          %361 = vsyncadd %s353, 0
          %s362 = smul.addr %s20, 8
          %s363 = smul.addr %s362, 8
          %s364 = scalar_lea.hbm %s3, %s363
          %s365 = sshll.u32 %s356, 4
          %s366 = int_to_ptr.vmem [resolvable:$true] %s365
          %s367 = sshll.u32 %s364, 4
          %s368 = int_to_ptr.hbm [resolvable:$true] %s367
          %373 = dma.vmem_to_hbm [thread:$0]  %s366, 1024, %s368, %s353, 256, 256, 16
        $region40: #{tpu_custom_call.1} parent=31 // pred_fallthru
          _
      $region32: #{tpu_custom_call.1} parent=5 // pred_fallthru
        _
      %p374 = scmp.le.s32.totalorder 2, %s15
      // Predicated region
      $region41: #{tpu_custom_call.1} parent=5 // pred_check
        %p375 = pneg %p374
      $region42: #{tpu_custom_call.1} parent=5 // pred_check_branch
        %377 = sbr.rel (%p375) target = $region44
      $region43: #{tpu_custom_call.1} parent=5 // pred_region
        %s378 = ssub.s32 %s15, 2
        // Predicated region
        $region45: #{tpu_custom_call.1} parent=43 // pred_check
          %p379 = pneg %p112
        $region46: #{tpu_custom_call.1} parent=43 // pred_check_branch
          %381 = sbr.rel (%p379) target = $region48
        $region47: #{tpu_custom_call.1} parent=43 // pred_region
          %s382 = sand.u32 %s97, 1
          %s383 = scalar_lea.sflag [#allocation4], %s382
          %s384 = sand.u32 %s97, 1
          %s385 = smul.addr %s384, 64
          %s386 = scalar_lea.vmem [#allocation5], %s385
          %388 = dma.done %s383, 1024
        $region48: #{tpu_custom_call.1} parent=43 // pred_fallthru
          _
      $region44: #{tpu_custom_call.1} parent=5 // pred_fallthru
        _
    $region6: #{tpu_custom_call.1} parent=1 // loop_footer
      %s19 = sadd.s32 1, %s15
    $region7: #{tpu_custom_call.1} parent=1 // loop_footer_branch
      %14 = sbr.rel target = $region3
    $region8: #{tpu_custom_call.1} parent=1 // loop_exit
      _
    %389 = vsyncpa [#allocation3], 1
    %s390 = scalar_lea.sflag [#allocation3], 1
    %391 = vsyncpa %s390, 1
    %392 = vsyncpa [#allocation4], 1
    %s393 = scalar_lea.sflag [#allocation4], 1
    %394 = vsyncpa %s393, 1

</llo_original>
